<compile_context>
chip_gen: v6e
topology: v6e:2x2x1
jax: 0.10.0
libtpu: 0.0.40
codegen_flags: <defaults>
</compile_context>

<pallas_src>
import functools

import jax
import jax.numpy as jnp
import numpy as np
from jax.experimental import pallas as pl
from jax.experimental.pallas import tpu as pltpu


# ----------------------------- Pallas kernel -------------------------------

def _loc_attn_kernel(lens_ref,                 # VMEM (BB, 1) int32
                     enc_ref,                  # VMEM (BB, Tp, D_enc)
                     win_ref,                  # VMEM (BB*Tp, K)   im2col of att_prev
                     dec_ref,                  # VMEM (BB, A)      pre-computed mlp_dec(dec_z)
                     w_enc_ref,                # VMEM (D_enc, A)   mlp_enc.weight^T
                     b_enc_ref,                # VMEM (1, A)
                     w_att_ref,                # VMEM (K, A)       (mlp_att.weight @ conv.weight)^T
                     w_g_ref,                  # VMEM (1, A)       gvec.weight
                     b_g_ref,                  # SMEM (1, 1)       gvec.bias
                     c_ref,                    # out VMEM (BB, D_enc)
                     w_ref,                    # out VMEM (BB, Tp)
                     *, scaling: float, bb: int, t: int):
    d_enc = enc_ref.shape[2]
    a_dim = w_enc_ref.shape[1]

    enc3 = enc_ref[...]                                     # (BB, Tp, D)
    enc_flat = enc3.reshape(bb * t, d_enc)                  # leading-dim collapse (no relayout)

    # ---- big MXU matmuls on flattened rows (M = BB*Tp) ----
    enc_h = jnp.dot(enc_flat, w_enc_ref[...],
                    preferred_element_type=jnp.float32) + b_enc_ref[...]     # mlp_enc
    att_proj = jnp.dot(win_ref[...], w_att_ref[...],
                       preferred_element_type=jnp.float32)                    # conv + mlp_att folded

    s = (enc_h + att_proj).reshape(bb, t, a_dim) + dec_ref[...][:, None, :]   # + mlp_dec(dec_z)
    pre = jnp.tanh(s)                                        # (BB, Tp, A)

    # ---- scalar energies via lane reduce (no (T,A) transpose) ----
    e = jnp.sum(pre * w_g_ref[...][None], axis=-1) + b_g_ref[0, 0]            # (BB, Tp)

    # ---- pad mask + scaled softmax over time ----
    idx = jax.lax.broadcasted_iota(jnp.int32, (bb, t), 1)
    e = jnp.where(idx < lens_ref[...], e, -jnp.inf)

    se = scaling * e
    m = jnp.max(se, axis=1, keepdims=True)
    ex = jnp.exp(se - m)
    w = ex * pl.reciprocal(jnp.sum(ex, axis=1, keepdims=True))                # (BB, Tp)

    w_ref[...] = w.astype(w_ref.dtype)
    # context c[b] = sum_t w[b,t] * enc[b,t,:]
    c = jnp.sum(enc3.astype(jnp.float32) * w[:, :, None], axis=1)             # (BB, D)
    c_ref[...] = c.astype(c_ref.dtype)


# ------------------------------ wrapper ------------------------------------

def location_aware_attention(encoder_outputs, encoder_output_lens, dec_z,
                             att_prev, params, *, filter_size, scaling=2.0,
                             block_b=8):
    """Pallas implementation of LocationAwareAttention.forward.

    encoder_outputs: (B, T, D_enc)
    encoder_output_lens: (B,) int
    dec_z: (B, D_dec) or None -> zeros
    att_prev: (B, T) or None -> uniform over valid positions
    returns: c (B, D_enc) f32, w (B, T) f32
    """
    B, T, D_enc = encoder_outputs.shape
    A, D_dec = params["w_dec"].shape
    K = 2 * filter_size + 1

    lens = encoder_output_lens.astype(jnp.int32)

    if dec_z is None:
        dec_z = jnp.zeros((B, D_dec), jnp.float32)
    dec_z = dec_z.reshape(B, D_dec)

    if att_prev is None:
        pad_mask = jnp.arange(T)[None, :] >= lens[:, None]
        att_prev = (1.0 - pad_mask.astype(jnp.float32)) / \
            lens[:, None].astype(jnp.float32)
    att_prev = att_prev.astype(jnp.float32)

    # ---- pad batch / time so every block is a full sublane tile ----
    BB = block_b
    Bp = pl.cdiv(B, BB) * BB
    Tp = pl.cdiv(T, 8) * 8
    pad_b, pad_t = Bp - B, Tp - T

    enc_p = jnp.pad(encoder_outputs, ((0, pad_b), (0, pad_t), (0, 0)))
    att_p = jnp.pad(att_prev, ((0, pad_b), (0, pad_t)))
    lens_p = jnp.pad(lens, (0, pad_b), constant_values=Tp)   # padded rows: all "valid" -> no NaN
    dec_p = jnp.pad(dec_z, ((0, pad_b), (0, 0)))

    # ---- hoisted / folded weights (one-time XLA ops, no per-step XLU work) ----
    w_encT = params["w_enc"].T                               # (D_enc, A)
    b_enc = params["b_enc"].reshape(1, A).astype(jnp.float32)
    w_effT = (params["w_att"] @ params["w_conv"]).T          # (K, A): conv ∘ mlp_att folded
    dec_proj = (dec_p.astype(jnp.float32) @ params["w_dec"].T)   # (Bp, A): mlp_dec hoisted
    w_g = params["w_g"].reshape(1, A).astype(jnp.float32)
    b_g = params["b_g"].reshape(1, 1).astype(jnp.float32)

    # ---- im2col windows for the "same" 1-D conv over att_prev ----
    att_pad = jnp.pad(att_p, ((0, 0), (filter_size, filter_size)))   # (Bp, Tp+2F)
    win = jnp.stack([att_pad[:, k:k + Tp] for k in range(K)], axis=-1)   # (Bp, Tp, K)
    win_flat = win.reshape(Bp * Tp, K)

    lens_col = lens_p.reshape(Bp, 1)

    kernel = functools.partial(_loc_attn_kernel, scaling=float(scaling),
                               bb=BB, t=Tp)

    grid_spec = pltpu.PrefetchScalarGridSpec(
        num_scalar_prefetch=0,
        grid=(Bp // BB,),
        in_specs=[
            pl.BlockSpec((BB, 1),          lambda i: (i, 0)),      # lens
            pl.BlockSpec((BB, Tp, D_enc),  lambda i: (i, 0, 0)),   # encoder_outputs
            pl.BlockSpec((BB * Tp, K),     lambda i: (i, 0)),      # im2col windows
            pl.BlockSpec((BB, A),          lambda i: (i, 0)),      # mlp_dec(dec_z)
            pl.BlockSpec((D_enc, A),       lambda i: (0, 0)),      # mlp_enc.weight^T
            pl.BlockSpec((1, A),           lambda i: (0, 0)),      # mlp_enc.bias
            pl.BlockSpec((K, A),           lambda i: (0, 0)),      # folded conv/att weight
            pl.BlockSpec((1, A),           lambda i: (0, 0)),      # gvec.weight
            pl.BlockSpec(memory_space=pltpu.MemorySpace.SMEM),     # gvec.bias (scalar)
        ],
        out_specs=[
            pl.BlockSpec((BB, D_enc), lambda i: (i, 0)),           # context c
            pl.BlockSpec((BB, Tp),    lambda i: (i, 0)),           # attention w
        ],
    )

    c, w = pl.pallas_call(
        kernel,
        grid_spec=grid_spec,
        out_shape=(jax.ShapeDtypeStruct((Bp, D_enc), jnp.float32),
                   jax.ShapeDtypeStruct((Bp, Tp), jnp.float32)),
        compiler_params=pltpu.CompilerParams(
            dimension_semantics=("parallel",)),     # batch axis feeds both v7x TCs
    )(lens_col, enc_p, win_flat, dec_proj, w_encT, b_enc, w_effT, w_g, b_g)

    return c[:B], w[:B, :T]


# ------------------------- pure-JAX reference -------------------------------

def reference(encoder_outputs, lens, dec_z, att_prev, params, *, filter_size,
              scaling=2.0):
    B, T, _ = encoder_outputs.shape
    K = 2 * filter_size + 1
    enc_h = encoder_outputs @ params["w_enc"].T + params["b_enc"]          # (B,T,A)
    att_pad = jnp.pad(att_prev, ((0, 0), (filter_size, filter_size)))
    win = jnp.stack([att_pad[:, k:k + T] for k in range(K)], axis=-1)      # (B,T,K)
    conv = win @ params["w_conv"].T                                        # (B,T,C)
    att_proj = conv @ params["w_att"].T                                    # (B,T,A)
    dec_proj = (dec_z @ params["w_dec"].T)[:, None, :]                     # (B,1,A)
    pre = jnp.tanh(att_proj + enc_h + dec_proj)
    e = (pre @ params["w_g"].T)[..., 0] + params["b_g"]                    # (B,T)
    mask = jnp.arange(T)[None, :] >= lens[:, None]
    e = jnp.where(mask, -jnp.inf, e)
    w = jax.nn.softmax(scaling * e, axis=1)
    c = jnp.sum(encoder_outputs * w[..., None], axis=1)
    return c, w


# --------------------------------- main -------------------------------------

if __name__ == "__main__":
    # Small shapes consistent with the module.
    B, T = 2, 16
    D_enc, D_dec, A = 32, 32, 32
    C, filter_size = 4, 3
    K = 2 * filter_size + 1

    key = jax.random.PRNGKey(0)
    ks = jax.random.split(key, 10)

    def uni(k, shape, fan_in):
        bound = 1.0 / np.sqrt(fan_in)
        return jax.random.uniform(k, shape, jnp.float32, -bound, bound)

    # Deterministic parameter init (PyTorch-style fan_in uniform bounds).
    params = {
        "w_enc": uni(ks[0], (A, D_enc), D_enc),   # mlp_enc.weight
        "b_enc": uni(ks[1], (A,), D_enc),         # mlp_enc.bias
        "w_dec": uni(ks[2], (A, D_dec), D_dec),   # mlp_dec.weight (no bias)
        "w_att": uni(ks[3], (A, C), C),           # mlp_att.weight (no bias)
        "w_conv": uni(ks[4], (C, K), K),          # loc_conv.weight (C,1,1,K) squeezed
        "w_g": uni(ks[5], (1, A), A),             # gvec.weight
        "b_g": uni(ks[6], (1,), A),               # gvec.bias
    }

    encoder_outputs = jax.random.normal(ks[7], (B, T, D_enc), jnp.float32)
    dec_z = jax.random.normal(ks[8], (B, D_dec), jnp.float32)
    encoder_output_lens = jnp.array([16, 11], dtype=jnp.int32)

    # att_prev=None path of the PyTorch module: uniform over valid frames.
    pad_mask = jnp.arange(T)[None, :] >= encoder_output_lens[:, None]
    att_prev = (1.0 - pad_mask.astype(jnp.float32)) / \
        encoder_output_lens[:, None].astype(jnp.float32)

    c, w = location_aware_attention(
        encoder_outputs, encoder_output_lens, dec_z, att_prev, params,
        filter_size=filter_size, scaling=2.0)
    jax.block_until_ready((c, w))

    c_ref, w_ref = reference(
        encoder_outputs, encoder_output_lens, dec_z, att_prev, params,
        filter_size=filter_size, scaling=2.0)

    np.testing.assert_allclose(np.asarray(c), np.asarray(c_ref), rtol=1e-5, atol=1e-5)
    np.testing.assert_allclose(np.asarray(w), np.asarray(w_ref), rtol=1e-5, atol=1e-5)

    print("KERNEL_OK")
</pallas_src>

<mosaic_0001>
module attributes {stable_mosaic.version = 11 : i64} {
  func.func @_loc_attn_kernel(%arg0: i32, %arg1: memref<8x1xi32, #tpu.memory_space<vmem>>, %arg2: memref<8x16x32xf32, #tpu.memory_space<vmem>>, %arg3: memref<128x7xf32, #tpu.memory_space<vmem>>, %arg4: memref<8x32xf32, #tpu.memory_space<vmem>>, %arg5: memref<32x32xf32, #tpu.memory_space<vmem>>, %arg6: memref<1x32xf32, #tpu.memory_space<vmem>>, %arg7: memref<7x32xf32, #tpu.memory_space<vmem>>, %arg8: memref<1x32xf32, #tpu.memory_space<vmem>>, %arg9: memref<1x1xf32, #tpu.memory_space<smem>>, %arg10: memref<8x32xf32, #tpu.memory_space<vmem>>, %arg11: memref<8x16xf32, #tpu.memory_space<vmem>>) attributes {dimension_semantics = [#tpu.dimension_semantics<parallel>], iteration_bounds = array<i64: 1>, scalar_prefetch = 0 : i64, scratch_operands = 0 : i64, tpu.core_type = #tpu.core_type<tc>, window_params = [{transform_indices = @transform_0, window_bounds = array<i64: 8, 1>}, {transform_indices = @transform_1, window_bounds = array<i64: 8, 16, 32>}, {transform_indices = @transform_2, window_bounds = array<i64: 128, 7>}, {transform_indices = @transform_3, window_bounds = array<i64: 8, 32>}, {pipeline_mode = #tpu.pipeline_mode<synchronous>, transform_indices = @transform_4, window_bounds = array<i64: 32, 32>}, {pipeline_mode = #tpu.pipeline_mode<synchronous>, transform_indices = @transform_5, window_bounds = array<i64: 1, 32>}, {pipeline_mode = #tpu.pipeline_mode<synchronous>, transform_indices = @transform_6, window_bounds = array<i64: 7, 32>}, {pipeline_mode = #tpu.pipeline_mode<synchronous>, transform_indices = @transform_7, window_bounds = array<i64: 1, 32>}, {transform_indices = @transform_8, window_bounds = array<i64: 1, 1>}, {transform_indices = @transform_9, window_bounds = array<i64: 8, 32>}, {transform_indices = @transform_10, window_bounds = array<i64: 8, 16>}]} {
    %c0 = arith.constant 0 : index
    %c0_0 = arith.constant 0 : index
    %c0_1 = arith.constant 0 : index
    %0 = vector.load %arg2[%c0, %c0_0, %c0_1] : memref<8x16x32xf32, #tpu.memory_space<vmem>>, vector<8x16x32xf32>
    %1 = vector.shape_cast %0 : vector<8x16x32xf32> to vector<128x32xf32>
    %c0_2 = arith.constant 0 : index
    %c0_3 = arith.constant 0 : index
    %2 = vector.load %arg5[%c0_2, %c0_3] : memref<32x32xf32, #tpu.memory_space<vmem>>, vector<32x32xf32>
    %cst = arith.constant dense<0.000000e+00> : vector<128x32xf32>
    %3 = tpu.matmul %1, %2, %cst {dimension_numbers = #tpu.dot_dimension_numbers<[1], [0], [0], [1], [0, 0, 1, 1], [], []>} : vector<128x32xf32>, vector<32x32xf32>, vector<128x32xf32> -> vector<128x32xf32>
    %c0_4 = arith.constant 0 : index
    %c0_5 = arith.constant 0 : index
    %4 = vector.load %arg6[%c0_4, %c0_5] : memref<1x32xf32, #tpu.memory_space<vmem>>, vector<1x32xf32>
    %5 = vector.broadcast %4 : vector<1x32xf32> to vector<128x32xf32>
    %6 = arith.addf %3, %5 : vector<128x32xf32>
    %c0_6 = arith.constant 0 : index
    %c0_7 = arith.constant 0 : index
    %7 = vector.load %arg3[%c0_6, %c0_7] : memref<128x7xf32, #tpu.memory_space<vmem>>, vector<128x7xf32>
    %c0_8 = arith.constant 0 : index
    %c0_9 = arith.constant 0 : index
    %8 = vector.load %arg7[%c0_8, %c0_9] : memref<7x32xf32, #tpu.memory_space<vmem>>, vector<7x32xf32>
    %cst_10 = arith.constant dense<0.000000e+00> : vector<128x32xf32>
    %9 = tpu.matmul %7, %8, %cst_10 {dimension_numbers = #tpu.dot_dimension_numbers<[1], [0], [0], [1], [0, 0, 1, 1], [], []>} : vector<128x7xf32>, vector<7x32xf32>, vector<128x32xf32> -> vector<128x32xf32>
    %10 = arith.addf %6, %9 : vector<128x32xf32>
    %11 = vector.shape_cast %10 : vector<128x32xf32> to vector<8x16x32xf32>
    %c0_11 = arith.constant 0 : index
    %c0_12 = arith.constant 0 : index
    %12 = vector.load %arg4[%c0_11, %c0_12] : memref<8x32xf32, #tpu.memory_space<vmem>>, vector<8x32xf32>
    %13 = vector.shape_cast %12 : vector<8x32xf32> to vector<8x1x32xf32>
    %14 = vector.broadcast %13 : vector<8x1x32xf32> to vector<8x16x32xf32>
    %15 = arith.addf %11, %14 : vector<8x16x32xf32>
    %16 = math.tanh %15 : vector<8x16x32xf32>
    %c0_13 = arith.constant 0 : index
    %c0_14 = arith.constant 0 : index
    %17 = vector.load %arg8[%c0_13, %c0_14] : memref<1x32xf32, #tpu.memory_space<vmem>>, vector<1x32xf32>
    %18 = vector.shape_cast %17 : vector<1x32xf32> to vector<1x1x32xf32>
    %19 = vector.broadcast %18 : vector<1x1x32xf32> to vector<8x16x32xf32>
    %20 = arith.mulf %16, %19 : vector<8x16x32xf32>
    %cst_15 = arith.constant dense<0.000000e+00> : vector<8x16xf32>
    %21 = vector.multi_reduction <add>, %20, %cst_15 [2] : vector<8x16x32xf32> to vector<8x16xf32>
    %c0_16 = arith.constant 0 : index
    %c0_17 = arith.constant 0 : index
    %22 = memref.load %arg9[%c0_16, %c0_17] : memref<1x1xf32, #tpu.memory_space<smem>>
    %23 = vector.broadcast %22 : f32 to vector<8x16xf32>
    %24 = arith.addf %21, %23 : vector<8x16xf32>
    %25 = tpu.iota {dimensions = array<i32: 1>} : vector<8x16xi32>
    %c0_18 = arith.constant 0 : index
    %c0_19 = arith.constant 0 : index
    %26 = vector.load %arg1[%c0_18, %c0_19] : memref<8x1xi32, #tpu.memory_space<vmem>>, vector<8x1xi32>
    %27 = vector.broadcast %26 : vector<8x1xi32> to vector<8x16xi32>
    %28 = arith.cmpi slt, %25, %27 : vector<8x16xi32>
    %cst_20 = arith.constant 0xFF800000 : f32
    %29 = vector.broadcast %cst_20 : f32 to vector<8x16xf32>
    %30 = arith.select %28, %24, %29 : vector<8x16xi1>, vector<8x16xf32>
    %cst_21 = arith.constant 2.000000e+00 : f32
    %31 = vector.broadcast %cst_21 : f32 to vector<8x16xf32>
    %32 = arith.mulf %31, %30 : vector<8x16xf32>
    %cst_22 = arith.constant dense<0xFF800000> : vector<8xf32>
    %33 = vector.multi_reduction <maximumf>, %32, %cst_22 [1] : vector<8x16xf32> to vector<8xf32>
    %34 = vector.shape_cast %33 : vector<8xf32> to vector<8x1xf32>
    %35 = vector.broadcast %34 : vector<8x1xf32> to vector<8x16xf32>
    %36 = arith.subf %32, %35 : vector<8x16xf32>
    %37 = math.exp %36 : vector<8x16xf32>
    %cst_23 = arith.constant dense<0.000000e+00> : vector<8xf32>
    %38 = vector.multi_reduction <add>, %37, %cst_23 [1] : vector<8x16xf32> to vector<8xf32>
    %39 = vector.shape_cast %38 : vector<8xf32> to vector<8x1xf32>
    %40 = tpu.reciprocal %39 : vector<8x1xf32> -> vector<8x1xf32>
    %41 = vector.broadcast %40 : vector<8x1xf32> to vector<8x16xf32>
    %42 = arith.mulf %37, %41 : vector<8x16xf32>
    %c0_24 = arith.constant 0 : index
    %c0_25 = arith.constant 0 : index
    %43 = vector.load %arg11[%c0_24, %c0_25] : memref<8x16xf32, #tpu.memory_space<vmem>>, vector<8x16xf32>
    tpu.vector_store %arg11[%c0_24, %c0_25], %42 {strides = array<i32>} : memref<8x16xf32, #tpu.memory_space<vmem>>, vector<8x16xf32>,
    %44 = vector.shape_cast %42 : vector<8x16xf32> to vector<8x16x1xf32>
    %45 = vector.broadcast %44 : vector<8x16x1xf32> to vector<8x16x32xf32>
    %46 = arith.mulf %0, %45 : vector<8x16x32xf32>
    %cst_26 = arith.constant dense<0.000000e+00> : vector<8x32xf32>
    %47 = vector.multi_reduction <add>, %46, %cst_26 [1] : vector<8x16x32xf32> to vector<8x32xf32>
    %c0_27 = arith.constant 0 : index
    %c0_28 = arith.constant 0 : index
    %48 = vector.load %arg10[%c0_27, %c0_28] : memref<8x32xf32, #tpu.memory_space<vmem>>, vector<8x32xf32>
    tpu.vector_store %arg10[%c0_27, %c0_28], %47 {strides = array<i32>} : memref<8x32xf32, #tpu.memory_space<vmem>>, vector<8x32xf32>,
    return
  }
  func.func @transform_0(%arg0: i32) -> (i32, i32) {
    %c0_i32 = arith.constant 0 : i32
    %c0_i32_0 = arith.constant 0 : i32
    return %arg0, %c0_i32 : i32, i32
  }
  func.func @transform_1(%arg0: i32) -> (i32, i32, i32) {
    %c0_i32 = arith.constant 0 : i32
    %c0_i32_0 = arith.constant 0 : i32
    %c0_i32_1 = arith.constant 0 : i32
    return %arg0, %c0_i32, %c0_i32_0 : i32, i32, i32
  }
  func.func @transform_2(%arg0: i32) -> (i32, i32) {
    %c0_i32 = arith.constant 0 : i32
    %c0_i32_0 = arith.constant 0 : i32
    return %arg0, %c0_i32 : i32, i32
  }
  func.func @transform_3(%arg0: i32) -> (i32, i32) {
    %c0_i32 = arith.constant 0 : i32
    %c0_i32_0 = arith.constant 0 : i32
    return %arg0, %c0_i32 : i32, i32
  }
  func.func @transform_4(%arg0: i32) -> (i32, i32) {
    %c0_i32 = arith.constant 0 : i32
    %c0_i32_0 = arith.constant 0 : i32
    %c0_i32_1 = arith.constant 0 : i32
    return %c0_i32, %c0_i32_0 : i32, i32
  }
  func.func @transform_5(%arg0: i32) -> (i32, i32) {
    %c0_i32 = arith.constant 0 : i32
    %c0_i32_0 = arith.constant 0 : i32
    %c0_i32_1 = arith.constant 0 : i32
    return %c0_i32, %c0_i32_0 : i32, i32
  }
  func.func @transform_6(%arg0: i32) -> (i32, i32) {
    %c0_i32 = arith.constant 0 : i32
    %c0_i32_0 = arith.constant 0 : i32
    %c0_i32_1 = arith.constant 0 : i32
    return %c0_i32, %c0_i32_0 : i32, i32
  }
  func.func @transform_7(%arg0: i32) -> (i32, i32) {
    %c0_i32 = arith.constant 0 : i32
    %c0_i32_0 = arith.constant 0 : i32
    %c0_i32_1 = arith.constant 0 : i32
    return %c0_i32, %c0_i32_0 : i32, i32
  }
  func.func @transform_8(%arg0: i32) -> (i32, i32) {
    %c0_i32 = arith.constant 0 : i32
    %c0_i32_0 = arith.constant 0 : i32
    %c0_i32_1 = arith.constant 0 : i32
    return %c0_i32, %c0_i32_0 : i32, i32
  }
  func.func @transform_9(%arg0: i32) -> (i32, i32) {
    %c0_i32 = arith.constant 0 : i32
    %c0_i32_0 = arith.constant 0 : i32
    return %arg0, %c0_i32 : i32, i32
  }
  func.func @transform_10(%arg0: i32) -> (i32, i32) {
    %c0_i32 = arith.constant 0 : i32
    %c0_i32_0 = arith.constant 0 : i32
    return %arg0, %c0_i32 : i32, i32
  }
}

</mosaic_0001>

<llo_original>
// kernel: tpu_custom_call.1
$region0: #{tpu_custom_call.1}
  #allocation0 [shape = 'u32[]', space=smem, size = 0x4, offset = 0x4, fixed_abs, tag = 'smem constant byte address 0x4 - core index']
  #allocation1 [shape = 'u32[144,128]{1,0:T(1,128)}', space=vmem, size = 0x12000, scoped, tag = 'internal scratch']
  #allocation2 [shape = 'f32[1,1]{1,0:T(1,128)S(6)}', space=smem, size = 0x200, scoped, tag = 'scoped memory for tpu_custom_call.1']
  %s0 = inlined_call_operand.vmem [shape: s32[8,1], index: 0, kind: input, shape index: {}]
  %s1 = inlined_call_operand.vmem [shape: f32[8,16,32], index: 1, kind: input, shape index: {}]
  %s2 = inlined_call_operand.vmem [shape: f32[128,7], index: 2, kind: input, shape index: {}]
  %s3 = inlined_call_operand.vmem [shape: f32[8,32], index: 3, kind: input, shape index: {}]
  %s4 = inlined_call_operand.hbm [shape: f32[32,32], index: 4, kind: input, shape index: {}]
  %s5 = inlined_call_operand.vmem [shape: f32[1,32], index: 5, kind: input, shape index: {}]
  %s6 = inlined_call_operand.vmem [shape: f32[7,32], index: 6, kind: input, shape index: {}]
  %s7 = inlined_call_operand.vmem [shape: f32[1,32], index: 7, kind: input, shape index: {}]
  %s8 = inlined_call_operand.<no memory space> [shape: f32[1,1], index: 8, kind: input, shape index: {}]
  %s9 = inlined_call_operand.hbm [shape: f32[8,32], index: 9, kind: output, shape index: {0}]
  %s10 = inlined_call_operand.hbm [shape: f32[8,16], index: 10, kind: output, shape index: {1}]
  %11 = xla_tuple %s9, %s10
  %s12 = sld [smem:[#allocation0]]
  $region58: #{tpu_custom_call.1} parent=0
    _
  %s14 = ssub.s32 1, %s12
  %s15 = scalar_select 0, %s14, %s12
  %16 = sst [smem:[#allocation2]] %s8
  $region1: #{tpu_custom_call.1} parent=0
    #allocation3 [shape = 'u8[16384]{0}', space=vmem, size = 0x4000, scoped, tag = 'input window, operand 4, single buffered']
    #allocation4 [shape = 's32[1]{0}', space=sflag, size = 0x4, scoped, tag = 'scoped memory for tpu_custom_call.1']
    #allocation5 [shape = 's32[1]{0}', space=sflag, size = 0x4, scoped, tag = 'scoped memory for tpu_custom_call.1']
    #allocation6 [shape = 'u8[4096]{0}', space=vmem, size = 0x1000, scoped, tag = 'output window, operand 0, single buffered']
    #allocation7 [shape = 'u8[4096]{0}', space=vmem, size = 0x1000, scoped, tag = 'output window, operand 1, single buffered']
    #allocation8 [shape = 's32[1]{0}', space=sflag, size = 0x4, scoped, tag = 'scoped memory for tpu_custom_call.1']
    %17 = vsyncpa [#allocation4], 0
    %18 = vsyncpa [#allocation5], 0
    %19 = vsyncpa [#allocation8], 0
    // Predicated region
    $region2: #{tpu_custom_call.1} parent=1 // pred_check
      _
    $region3: #{tpu_custom_call.1} parent=1 // pred_check_branch
      %21 = sbr.rel (0) target = $region5
    $region4: #{tpu_custom_call.1} parent=1 // pred_region
      _
    $region5: #{tpu_custom_call.1} parent=1 // pred_fallthru
      _
    // Predicated region
    $region6: #{tpu_custom_call.1} parent=1 // pred_check
      _
    $region7: #{tpu_custom_call.1} parent=1 // pred_check_branch
      %23 = sbr.rel (0) target = $region9
    $region8: #{tpu_custom_call.1} parent=1 // pred_region
      _
    $region9: #{tpu_custom_call.1} parent=1 // pred_fallthru
      _
    // Predicated region
    $region10: #{tpu_custom_call.1} parent=1 // pred_check
      _
    $region11: #{tpu_custom_call.1} parent=1 // pred_check_branch
      %25 = sbr.rel (0) target = $region13
    $region12: #{tpu_custom_call.1} parent=1 // pred_region
      _
    $region13: #{tpu_custom_call.1} parent=1 // pred_fallthru
      _
    // Predicated region
    $region14: #{tpu_custom_call.1} parent=1 // pred_check
      _
    $region15: #{tpu_custom_call.1} parent=1 // pred_check_branch
      %27 = sbr.rel (0) target = $region17
    $region16: #{tpu_custom_call.1} parent=1 // pred_region
      _
    $region17: #{tpu_custom_call.1} parent=1 // pred_fallthru
      _
    // Predicated region
    $region18: #{tpu_custom_call.1} parent=1 // pred_check
      _
    $region19: #{tpu_custom_call.1} parent=1 // pred_check_branch
      %29 = sbr.rel (0) target = $region21
    $region20: #{tpu_custom_call.1} parent=1 // pred_region
      %s31 = ssub.s32 512, 512
      %32 = vsyncadd [#allocation4], %s31
      %s33 = sshll.u32 [#allocation3], 4
      %s34 = int_to_ptr.vmem [resolvable:$true] %s33
      %39 = dma.hbm_to_vmem [thread:$0]  %s4, 512, %s34, [#allocation4], 128, 128, 8
    $region21: #{tpu_custom_call.1} parent=1 // pred_fallthru
      _
    // Predicated region
    $region22: #{tpu_custom_call.1} parent=1 // pred_check
      _
    $region23: #{tpu_custom_call.1} parent=1 // pred_check_branch
      %41 = sbr.rel (0) target = $region25
    $region24: #{tpu_custom_call.1} parent=1 // pred_region
      _
    $region25: #{tpu_custom_call.1} parent=1 // pred_fallthru
      _
    // Predicated region
    $region26: #{tpu_custom_call.1} parent=1 // pred_check
      _
    $region27: #{tpu_custom_call.1} parent=1 // pred_check_branch
      %43 = sbr.rel (0) target = $region29
    $region28: #{tpu_custom_call.1} parent=1 // pred_region
      _
    $region29: #{tpu_custom_call.1} parent=1 // pred_fallthru
      _
    // Predicated region
    $region30: #{tpu_custom_call.1} parent=1 // pred_check
      _
    $region31: #{tpu_custom_call.1} parent=1 // pred_check_branch
      %45 = sbr.rel (0) target = $region33
    $region32: #{tpu_custom_call.1} parent=1 // pred_region
      _
    $region33: #{tpu_custom_call.1} parent=1 // pred_fallthru
      _
    // Predicated region
    $region34: #{tpu_custom_call.1} parent=1 // pred_check
      _
    $region35: #{tpu_custom_call.1} parent=1 // pred_check_branch
      %47 = sbr.rel (0) target = $region37
    $region36: #{tpu_custom_call.1} parent=1 // pred_region
      _
    $region37: #{tpu_custom_call.1} parent=1 // pred_fallthru
      _
    // Predicated region
    $region38: #{tpu_custom_call.1} parent=1 // pred_check
      _
    $region39: #{tpu_custom_call.1} parent=1 // pred_check_branch
      %49 = sbr.rel (0) target = $region41
    $region40: #{tpu_custom_call.1} parent=1 // pred_region
      %50 = dma.done [#allocation4], 512
    $region41: #{tpu_custom_call.1} parent=1 // pred_fallthru
      _
    %v51 = vld [vmem:[%s1] sm:$0xff]
    %v52 = vld [vmem:[%s1 + $0x8] sm:$0xff]
    %v53 = vld [vmem:[%s1 + $0x10] sm:$0xff]
    %v54 = vld [vmem:[%s1 + $0x18] sm:$0xff]
    %v55 = vld [vmem:[%s1 + $0x20] sm:$0xff]
    %v56 = vld [vmem:[%s1 + $0x28] sm:$0xff]
    %v57 = vld [vmem:[%s1 + $0x30] sm:$0xff]
    %v58 = vld [vmem:[%s1 + $0x38] sm:$0xff]
    %v59 = vld [vmem:[%s1 + $0x40] sm:$0xff]
    %v60 = vld [vmem:[%s1 + $0x48] sm:$0xff]
    %v61 = vld [vmem:[%s1 + $0x50] sm:$0xff]
    %v62 = vld [vmem:[%s1 + $0x58] sm:$0xff]
    %v63 = vld [vmem:[%s1 + $0x60] sm:$0xff]
    %v64 = vld [vmem:[%s1 + $0x68] sm:$0xff]
    %v65 = vld [vmem:[%s1 + $0x70] sm:$0xff]
    %v66 = vld [vmem:[%s1 + $0x78] sm:$0xff]
    %v67 = vld [vmem:[#allocation3] sm:$0xff]
    %v68 = vld [vmem:[#allocation3 + $0x8] sm:$0xff]
    %v69 = vld [vmem:[#allocation3 + $0x10] sm:$0xff]
    %v70 = vld [vmem:[#allocation3 + $0x18] sm:$0xff]
    %v71 = vld [vmem:[%s5] sm:$0x1]
    %v73 = vlaneseq
    %v74 = vshrl.u32 %v73, 7
    %v75 = vsub.s32 0, %v74
    %v76 = vrot.slane %v71, %v75
    %vm78 = vcmask 261120
    %v80 = vsel %vm78, %v51, 0
    %v83 = vsel %vm78, %v52, 0
    %v86 = vsel %vm78, %v53, 0
    %v89 = vsel %vm78, %v54, 0
    %v92 = vsel %vm78, %v55, 0
    %v95 = vsel %vm78, %v56, 0
    %v98 = vsel %vm78, %v57, 0
    %v101 = vsel %vm78, %v58, 0
    %v104 = vsel %vm78, %v59, 0
    %v107 = vsel %vm78, %v60, 0
    %v110 = vsel %vm78, %v61, 0
    %v113 = vsel %vm78, %v62, 0
    %v116 = vsel %vm78, %v63, 0
    %v119 = vsel %vm78, %v64, 0
    %v122 = vsel %vm78, %v65, 0
    %v125 = vsel %vm78, %v66, 0
    %127 = vmatprep.subr.mxu0 0.0
    %128 = vmatpush1.msra.mxu0 0.0
    %129 = vmatprep.subr.mxu0 0.0
    %130 = vmatpush1.msra.mxu0 0.0
    %131 = vmatprep.subr.mxu0 0.0
    %132 = vmatpush1.msra.mxu0 0.0
    %133 = vmatprep.subr.mxu0 0.0
    %134 = vmatpush1.msra.mxu0 0.0
    %135 = vmatprep.subr.mxu0 0.0
    %136 = vmatpush1.msra.mxu0 0.0
    %137 = vmatprep.subr.mxu0 0.0
    %138 = vmatpush1.msra.mxu0 0.0
    %139 = vmatprep.subr.mxu0 0.0
    %140 = vmatpush1.msra.mxu0 0.0
    %141 = vmatprep.subr.mxu0 0.0
    %142 = vmatpush1.msra.mxu0 0.0
    %143 = vmatprep.subr.mxu0 0.0
    %144 = vmatpush1.msra.mxu0 0.0
    %145 = vmatprep.subr.mxu0 0.0
    %146 = vmatpush1.msra.mxu0 0.0
    %147 = vmatprep.subr.mxu0 0.0
    %148 = vmatpush1.msra.mxu0 0.0
    %149 = vmatprep.subr.mxu0 0.0
    %150 = vmatpush1.msra.mxu0 0.0
    %151 = vmatprep.subr.mxu0 0.0
    %152 = vmatpush1.msra.mxu0 %v70
    %153 = vmatprep.subr.mxu0 0.0
    %154 = vmatpush1.msra.mxu0 %v69
    %155 = vmatprep.subr.mxu0 0.0
    %156 = vmatpush1.msra.mxu0 %v68
    %157 = vmatprep.subr.mxu0 0.0
    %158 = vmatpush1.msra.mxu0 %v67
    %159 = vmatprep.subr.mxu0 0.0
    %160 = vmatpush2.msra.mxu0 0.0
    %161 = vmatprep.subr.mxu0 0.0
    %162 = vmatpush2.msra.mxu0 0.0
    %163 = vmatprep.subr.mxu0 0.0
    %164 = vmatpush2.msra.mxu0 0.0
    %165 = vmatprep.subr.mxu0 0.0
    %166 = vmatpush2.msra.mxu0 0.0
    %167 = vmatprep.subr.mxu0 0.0
    %168 = vmatpush2.msra.mxu0 0.0
    %169 = vmatprep.subr.mxu0 0.0
    %170 = vmatpush2.msra.mxu0 0.0
    %171 = vmatprep.subr.mxu0 0.0
    %172 = vmatpush2.msra.mxu0 0.0
    %173 = vmatprep.subr.mxu0 0.0
    %174 = vmatpush2.msra.mxu0 0.0
    %175 = vmatprep.subr.mxu0 0.0
    %176 = vmatpush2.msra.mxu0 0.0
    %177 = vmatprep.subr.mxu0 0.0
    %178 = vmatpush2.msra.mxu0 0.0
    %179 = vmatprep.subr.mxu0 0.0
    %180 = vmatpush2.msra.mxu0 0.0
    %181 = vmatprep.subr.mxu0 0.0
    %182 = vmatpush2.msra.mxu0 0.0
    %183 = vmatprep.subr.mxu0 0.0
    %184 = vmatpush2.msra.mxu0 0.0
    %185 = vmatprep.subr.mxu0 0.0
    %186 = vmatpush2.msra.mxu0 0.0
    %187 = vmatprep.subr.mxu0 0.0
    %188 = vmatpush2.msra.mxu0 0.0
    %189 = vmatprep.subr.mxu0 0.0
    %190 = vmatpush2.msra.mxu0 0.0
    %191 = vmatprep.mubr.f32.mxu0 0.0
    %192 = vmatmul.mubr.f32.gmra.mxu0 %v80
    %v193 = vpop.f32.mrf.mxu0
    %v194 = vadd.f32 %v76, %v193
    %v195 = vpop.f32.mrf.mxu0
    %196 = vmatprep.mubr.f32.mxu0 0.0
    %197 = vmatmul.mubr.f32.gmra.mxu0 %v83
    %v198 = vpop.f32.mrf.mxu0
    %v199 = vadd.f32 %v76, %v198
    %v200 = vpop.f32.mrf.mxu0
    %201 = vmatprep.mubr.f32.mxu0 0.0
    %202 = vmatmul.mubr.f32.gmra.mxu0 %v86
    %v203 = vpop.f32.mrf.mxu0
    %v204 = vadd.f32 %v76, %v203
    %v205 = vpop.f32.mrf.mxu0
    %206 = vmatprep.mubr.f32.mxu0 0.0
    %207 = vmatmul.mubr.f32.gmra.mxu0 %v89
    %v208 = vpop.f32.mrf.mxu0
    %v209 = vadd.f32 %v76, %v208
    %v210 = vpop.f32.mrf.mxu0
    %211 = vmatprep.mubr.f32.mxu0 0.0
    %212 = vmatmul.mubr.f32.gmra.mxu0 %v92
    %v213 = vpop.f32.mrf.mxu0
    %v214 = vadd.f32 %v76, %v213
    %v215 = vpop.f32.mrf.mxu0
    %216 = vmatprep.mubr.f32.mxu0 0.0
    %217 = vmatmul.mubr.f32.gmra.mxu0 %v95
    %v218 = vpop.f32.mrf.mxu0
    %v219 = vadd.f32 %v76, %v218
    %v220 = vpop.f32.mrf.mxu0
    %221 = vmatprep.mubr.f32.mxu0 0.0
    %222 = vmatmul.mubr.f32.gmra.mxu0 %v98
    %v223 = vpop.f32.mrf.mxu0
    %v224 = vadd.f32 %v76, %v223
    %v225 = vpop.f32.mrf.mxu0
    %226 = vmatprep.mubr.f32.mxu0 0.0
    %227 = vmatmul.mubr.f32.gmra.mxu0 %v101
    %v228 = vpop.f32.mrf.mxu0
    %v229 = vadd.f32 %v76, %v228
    %v230 = vpop.f32.mrf.mxu0
    %231 = vmatprep.mubr.f32.mxu0 0.0
    %232 = vmatmul.mubr.f32.gmra.mxu0 %v104
    %v233 = vpop.f32.mrf.mxu0
    %v234 = vadd.f32 %v76, %v233
    %v235 = vpop.f32.mrf.mxu0
    %236 = vmatprep.mubr.f32.mxu0 0.0
    %237 = vmatmul.mubr.f32.gmra.mxu0 %v107
    %v238 = vpop.f32.mrf.mxu0
    %v239 = vadd.f32 %v76, %v238
    %v240 = vpop.f32.mrf.mxu0
    %241 = vmatprep.mubr.f32.mxu0 0.0
    %242 = vmatmul.mubr.f32.gmra.mxu0 %v110
    %v243 = vpop.f32.mrf.mxu0
    %v244 = vadd.f32 %v76, %v243
    %v245 = vpop.f32.mrf.mxu0
    %246 = vmatprep.mubr.f32.mxu0 0.0
    %247 = vmatmul.mubr.f32.gmra.mxu0 %v113
    %v248 = vpop.f32.mrf.mxu0
    %v249 = vadd.f32 %v76, %v248
    %v250 = vpop.f32.mrf.mxu0
    %251 = vmatprep.mubr.f32.mxu0 0.0
    %252 = vmatmul.mubr.f32.gmra.mxu0 %v116
    %v253 = vpop.f32.mrf.mxu0
    %v254 = vadd.f32 %v76, %v253
    %v255 = vpop.f32.mrf.mxu0
    %256 = vmatprep.mubr.f32.mxu0 0.0
    %257 = vmatmul.mubr.f32.gmra.mxu0 %v119
    %v258 = vpop.f32.mrf.mxu0
    %v259 = vadd.f32 %v76, %v258
    %v260 = vpop.f32.mrf.mxu0
    %261 = vmatprep.mubr.f32.mxu0 0.0
    %262 = vmatmul.mubr.f32.gmra.mxu0 %v122
    %v263 = vpop.f32.mrf.mxu0
    %v264 = vadd.f32 %v76, %v263
    %v265 = vpop.f32.mrf.mxu0
    %266 = vmatprep.mubr.f32.mxu0 0.0
    %267 = vmatmul.mubr.f32.gmra.mxu0 %v125
    %v268 = vpop.f32.mrf.mxu0
    %v269 = vadd.f32 %v76, %v268
    %v270 = vpop.f32.mrf.mxu0
    %271 = vdwg.mxu0
    %v272 = vld [vmem:[%s2] sm:$0xff]
    %v273 = vld [vmem:[%s2 + $0x8] sm:$0xff]
    %v274 = vld [vmem:[%s2 + $0x10] sm:$0xff]
    %v275 = vld [vmem:[%s2 + $0x18] sm:$0xff]
    %v276 = vld [vmem:[%s2 + $0x20] sm:$0xff]
    %v277 = vld [vmem:[%s2 + $0x28] sm:$0xff]
    %v278 = vld [vmem:[%s2 + $0x30] sm:$0xff]
    %v279 = vld [vmem:[%s2 + $0x38] sm:$0xff]
    %v280 = vld [vmem:[%s2 + $0x40] sm:$0xff]
    %v281 = vld [vmem:[%s2 + $0x48] sm:$0xff]
    %v282 = vld [vmem:[%s2 + $0x50] sm:$0xff]
    %v283 = vld [vmem:[%s2 + $0x58] sm:$0xff]
    %v284 = vld [vmem:[%s2 + $0x60] sm:$0xff]
    %v285 = vld [vmem:[%s2 + $0x68] sm:$0xff]
    %v286 = vld [vmem:[%s2 + $0x70] sm:$0xff]
    %v287 = vld [vmem:[%s2 + $0x78] sm:$0xff]
    %v288 = vld [vmem:[%s6] sm:$0x7f]
    %vm289 = vcmask 56320
    %v291 = vsel %vm289, %v272, 0
    %v294 = vsel %vm289, %v273, 0
    %v297 = vsel %vm289, %v274, 0
    %v300 = vsel %vm289, %v275, 0
    %v303 = vsel %vm289, %v276, 0
    %v306 = vsel %vm289, %v277, 0
    %v309 = vsel %vm289, %v278, 0
    %v312 = vsel %vm289, %v279, 0
    %v315 = vsel %vm289, %v280, 0
    %v318 = vsel %vm289, %v281, 0
    %v321 = vsel %vm289, %v282, 0
    %v324 = vsel %vm289, %v283, 0
    %v327 = vsel %vm289, %v284, 0
    %v330 = vsel %vm289, %v285, 0
    %v333 = vsel %vm289, %v286, 0
    %v336 = vsel %vm289, %v287, 0
    %vm338 = vcmask 1046528
    %v340 = vsel %vm338, %v288, 0
    %342 = vmatprep.subr.mxu0 0.0
    %343 = vmatpush1.msra.mxu0 0.0
    %344 = vmatprep.subr.mxu0 0.0
    %345 = vmatpush1.msra.mxu0 0.0
    %346 = vmatprep.subr.mxu0 0.0
    %347 = vmatpush1.msra.mxu0 0.0
    %348 = vmatprep.subr.mxu0 0.0
    %349 = vmatpush1.msra.mxu0 0.0
    %350 = vmatprep.subr.mxu0 0.0
    %351 = vmatpush1.msra.mxu0 0.0
    %352 = vmatprep.subr.mxu0 0.0
    %353 = vmatpush1.msra.mxu0 0.0
    %354 = vmatprep.subr.mxu0 0.0
    %355 = vmatpush1.msra.mxu0 0.0
    %356 = vmatprep.subr.mxu0 0.0
    %357 = vmatpush1.msra.mxu0 0.0
    %358 = vmatprep.subr.mxu0 0.0
    %359 = vmatpush1.msra.mxu0 0.0
    %360 = vmatprep.subr.mxu0 0.0
    %361 = vmatpush1.msra.mxu0 0.0
    %362 = vmatprep.subr.mxu0 0.0
    %363 = vmatpush1.msra.mxu0 0.0
    %364 = vmatprep.subr.mxu0 0.0
    %365 = vmatpush1.msra.mxu0 0.0
    %366 = vmatprep.subr.mxu0 0.0
    %367 = vmatpush1.msra.mxu0 0.0
    %368 = vmatprep.subr.mxu0 0.0
    %369 = vmatpush1.msra.mxu0 0.0
    %370 = vmatprep.subr.mxu0 0.0
    %371 = vmatpush1.msra.mxu0 0.0
    %372 = vmatprep.subr.mxu0 0.0
    %373 = vmatpush1.msra.mxu0 %v340
    %374 = vmatprep.subr.mxu0 0.0
    %375 = vmatpush2.msra.mxu0 0.0
    %376 = vmatprep.subr.mxu0 0.0
    %377 = vmatpush2.msra.mxu0 0.0
    %378 = vmatprep.subr.mxu0 0.0
    %379 = vmatpush2.msra.mxu0 0.0
    %380 = vmatprep.subr.mxu0 0.0
    %381 = vmatpush2.msra.mxu0 0.0
    %382 = vmatprep.subr.mxu0 0.0
    %383 = vmatpush2.msra.mxu0 0.0
    %384 = vmatprep.subr.mxu0 0.0
    %385 = vmatpush2.msra.mxu0 0.0
    %386 = vmatprep.subr.mxu0 0.0
    %387 = vmatpush2.msra.mxu0 0.0
    %388 = vmatprep.subr.mxu0 0.0
    %389 = vmatpush2.msra.mxu0 0.0
    %390 = vmatprep.subr.mxu0 0.0
    %391 = vmatpush2.msra.mxu0 0.0
    %392 = vmatprep.subr.mxu0 0.0
    %393 = vmatpush2.msra.mxu0 0.0
    %394 = vmatprep.subr.mxu0 0.0
    %395 = vmatpush2.msra.mxu0 0.0
    %396 = vmatprep.subr.mxu0 0.0
    %397 = vmatpush2.msra.mxu0 0.0
    %398 = vmatprep.subr.mxu0 0.0
    %399 = vmatpush2.msra.mxu0 0.0
    %400 = vmatprep.subr.mxu0 0.0
    %401 = vmatpush2.msra.mxu0 0.0
    %402 = vmatprep.subr.mxu0 0.0
    %403 = vmatpush2.msra.mxu0 0.0
    %404 = vmatprep.subr.mxu0 0.0
    %405 = vmatpush2.msra.mxu0 0.0
    %406 = vmatprep.mubr.f32.mxu0 0.0
    %407 = vmatmul.mubr.f32.gmra.mxu0 %v291
    %v408 = vpop.f32.mrf.mxu0
    %v409 = vadd.f32 0.0, %v408
    %v410 = vpop.f32.mrf.mxu0
    %411 = vmatprep.mubr.f32.mxu0 0.0
    %412 = vmatmul.mubr.f32.gmra.mxu0 %v294
    %v413 = vpop.f32.mrf.mxu0
    %v414 = vadd.f32 0.0, %v413
    %v415 = vpop.f32.mrf.mxu0
    %416 = vmatprep.mubr.f32.mxu0 0.0
    %417 = vmatmul.mubr.f32.gmra.mxu0 %v297
    %v418 = vpop.f32.mrf.mxu0
    %v419 = vadd.f32 0.0, %v418
    %v420 = vpop.f32.mrf.mxu0
    %421 = vmatprep.mubr.f32.mxu0 0.0
    %422 = vmatmul.mubr.f32.gmra.mxu0 %v300
    %v423 = vpop.f32.mrf.mxu0
    %v424 = vadd.f32 0.0, %v423
    %v425 = vpop.f32.mrf.mxu0
    %426 = vmatprep.mubr.f32.mxu0 0.0
    %427 = vmatmul.mubr.f32.gmra.mxu0 %v303
    %v428 = vpop.f32.mrf.mxu0
    %v429 = vadd.f32 0.0, %v428
    %v430 = vpop.f32.mrf.mxu0
    %431 = vmatprep.mubr.f32.mxu0 0.0
    %432 = vmatmul.mubr.f32.gmra.mxu0 %v306
    %v433 = vpop.f32.mrf.mxu0
    %v434 = vadd.f32 0.0, %v433
    %v435 = vpop.f32.mrf.mxu0
    %436 = vmatprep.mubr.f32.mxu0 0.0
    %437 = vmatmul.mubr.f32.gmra.mxu0 %v309
    %v438 = vpop.f32.mrf.mxu0
    %v439 = vadd.f32 0.0, %v438
    %v440 = vpop.f32.mrf.mxu0
    %441 = vmatprep.mubr.f32.mxu0 0.0
    %442 = vmatmul.mubr.f32.gmra.mxu0 %v312
    %v443 = vpop.f32.mrf.mxu0
    %v444 = vadd.f32 0.0, %v443
    %v445 = vpop.f32.mrf.mxu0
    %446 = vmatprep.mubr.f32.mxu0 0.0
    %447 = vmatmul.mubr.f32.gmra.mxu0 %v315
    %v448 = vpop.f32.mrf.mxu0
    %v449 = vadd.f32 0.0, %v448
    %v450 = vpop.f32.mrf.mxu0
    %451 = vmatprep.mubr.f32.mxu0 0.0
    %452 = vmatmul.mubr.f32.gmra.mxu0 %v318
    %v453 = vpop.f32.mrf.mxu0
    %v454 = vadd.f32 0.0, %v453
    %v455 = vpop.f32.mrf.mxu0
    %456 = vmatprep.mubr.f32.mxu0 0.0
    %457 = vmatmul.mubr.f32.gmra.mxu0 %v321
    %v458 = vpop.f32.mrf.mxu0
    %v459 = vadd.f32 0.0, %v458
    %v460 = vpop.f32.mrf.mxu0
    %461 = vmatprep.mubr.f32.mxu0 0.0
    %462 = vmatmul.mubr.f32.gmra.mxu0 %v324
    %v463 = vpop.f32.mrf.mxu0
    %v464 = vadd.f32 0.0, %v463
    %v465 = vpop.f32.mrf.mxu0
    %466 = vmatprep.mubr.f32.mxu0 0.0
    %467 = vmatmul.mubr.f32.gmra.mxu0 %v327
    %v468 = vpop.f32.mrf.mxu0
    %v469 = vadd.f32 0.0, %v468
    %v470 = vpop.f32.mrf.mxu0
    %471 = vmatprep.mubr.f32.mxu0 0.0
    %472 = vmatmul.mubr.f32.gmra.mxu0 %v330
    %v473 = vpop.f32.mrf.mxu0
    %v474 = vadd.f32 0.0, %v473
    %v475 = vpop.f32.mrf.mxu0
    %476 = vmatprep.mubr.f32.mxu0 0.0
    %477 = vmatmul.mubr.f32.gmra.mxu0 %v333
    %v478 = vpop.f32.mrf.mxu0
    %v479 = vadd.f32 0.0, %v478
    %v480 = vpop.f32.mrf.mxu0
    %481 = vmatprep.mubr.f32.mxu0 0.0
    %482 = vmatmul.mubr.f32.gmra.mxu0 %v336
    %v483 = vpop.f32.mrf.mxu0
    %v484 = vadd.f32 0.0, %v483
    %v485 = vpop.f32.mrf.mxu0
    %486 = vdwg.mxu0
    %v487 = vadd.f32 %v194, %v409
    %v488 = vadd.f32 %v199, %v414
    %v489 = vadd.f32 %v204, %v419
    %v490 = vadd.f32 %v209, %v424
    %v491 = vadd.f32 %v214, %v429
    %v492 = vadd.f32 %v219, %v434
    %v493 = vadd.f32 %v224, %v439
    %v494 = vadd.f32 %v229, %v444
    %v495 = vadd.f32 %v234, %v449
    %v496 = vadd.f32 %v239, %v454
    %v497 = vadd.f32 %v244, %v459
    %v498 = vadd.f32 %v249, %v464
    %v499 = vadd.f32 %v254, %v469
    %v500 = vadd.f32 %v259, %v474
    %v501 = vadd.f32 %v264, %v479
    %v502 = vadd.f32 %v269, %v484
    %v503 = vld [vmem:[%s3] sm:$0xff]
    %v505 = vcombine.high %v503, %v503
    %v507 = vunpack.c.l.s4 1966171168
    %v508 = vunpack.c.0.s8 %v507
    %v509 = vlaneseq
    %v510 = vshrl.u32 %v509, 7
    %v511 = vsub.s32 %v508, %v510
    %v512 = vrot.slane %v503, %v511
    %v514 = vunpack.c.l.s4 1966171168
    %v515 = vunpack.c.0.s8 %v514
    %v516 = vlaneseq
    %v517 = vshrl.u32 %v516, 7
    %v518 = vsub.s32 %v515, %v517
    %v519 = vrot.slane %v505, %v518
    %v520 = vcombine.high %v512, %v512
    %v521 = vcombine.high %v519, %v519
    %v523 = vunpack.c.l.s4 1966171168
    %v524 = vunpack.c.0.s8 %v523
    %v525 = vlaneseq
    %v526 = vshrl.u32 %v525, 7
    %v527 = vsub.s32 %v524, %v526
    %v528 = vrot.slane %v512, %v527
    %v530 = vunpack.c.l.s4 1966171168
    %v531 = vunpack.c.0.s8 %v530
    %v532 = vlaneseq
    %v533 = vshrl.u32 %v532, 7
    %v534 = vsub.s32 %v531, %v533
    %v535 = vrot.slane %v519, %v534
    %v537 = vunpack.c.l.s4 1966171168
    %v538 = vunpack.c.0.s8 %v537
    %v539 = vlaneseq
    %v540 = vshrl.u32 %v539, 7
    %v541 = vsub.s32 %v538, %v540
    %v542 = vrot.slane %v520, %v541
    %v544 = vunpack.c.l.s4 1966171168
    %v545 = vunpack.c.0.s8 %v544
    %v546 = vlaneseq
    %v547 = vshrl.u32 %v546, 7
    %v548 = vsub.s32 %v545, %v547
    %v549 = vrot.slane %v521, %v548
    %v550 = vcombine.high %v528, %v528
    %v551 = vcombine.high %v535, %v535
    %v552 = vcombine.high %v542, %v542
    %v553 = vcombine.high %v549, %v549
    %v554 = vlaneseq
    %v555 = vshrl.u32 %v554, 7
    %v556 = vsub.s32 0, %v555
    %v557 = vrot.slane %v528, %v556
    %v558 = vlaneseq
    %v559 = vshrl.u32 %v558, 7
    %v560 = vsub.s32 0, %v559
    %v561 = vrot.slane %v542, %v560
    %v562 = vlaneseq
    %v563 = vshrl.u32 %v562, 7
    %v564 = vsub.s32 0, %v563
    %v565 = vrot.slane %v550, %v564
    %v566 = vlaneseq
    %v567 = vshrl.u32 %v566, 7
    %v568 = vsub.s32 0, %v567
    %v569 = vrot.slane %v552, %v568
    %v570 = vlaneseq
    %v571 = vshrl.u32 %v570, 7
    %v572 = vsub.s32 0, %v571
    %v573 = vrot.slane %v535, %v572
    %v574 = vlaneseq
    %v575 = vshrl.u32 %v574, 7
    %v576 = vsub.s32 0, %v575
    %v577 = vrot.slane %v549, %v576
    %v578 = vlaneseq
    %v579 = vshrl.u32 %v578, 7
    %v580 = vsub.s32 0, %v579
    %v581 = vrot.slane %v551, %v580
    %v582 = vlaneseq
    %v583 = vshrl.u32 %v582, 7
    %v584 = vsub.s32 0, %v583
    %v585 = vrot.slane %v553, %v584
    %v594 = vadd.f32 %v487, %v557
    %v595 = vadd.f32 %v488, %v557
    %v596 = vadd.f32 %v489, %v561
    %v597 = vadd.f32 %v490, %v561
    %v598 = vadd.f32 %v491, %v565
    %v599 = vadd.f32 %v492, %v565
    %v600 = vadd.f32 %v493, %v569
    %v601 = vadd.f32 %v494, %v569
    %v602 = vadd.f32 %v495, %v573
    %v603 = vadd.f32 %v496, %v573
    %v604 = vadd.f32 %v497, %v577
    %v605 = vadd.f32 %v498, %v577
    %v606 = vadd.f32 %v499, %v581
    %v607 = vadd.f32 %v500, %v581
    %v608 = vadd.f32 %v501, %v585
    %v609 = vadd.f32 %v502, %v585
    %v610 = vtanh.pop %v594
    %v611 = vtanh.pop %v595
    %v612 = vtanh.pop %v596
    %v613 = vtanh.pop %v597
    %v614 = vtanh.pop %v598
    %v615 = vtanh.pop %v599
    %v616 = vtanh.pop %v600
    %v617 = vtanh.pop %v601
    %v618 = vtanh.pop %v602
    %v619 = vtanh.pop %v603
    %v620 = vtanh.pop %v604
    %v621 = vtanh.pop %v605
    %v622 = vtanh.pop %v606
    %v623 = vtanh.pop %v607
    %v624 = vtanh.pop %v608
    %v625 = vtanh.pop %v609
    %v626 = vld [vmem:[%s7] sm:$0x1]
    %v628 = vlaneseq
    %v629 = vshrl.u32 %v628, 7
    %v630 = vsub.s32 0, %v629
    %v631 = vrot.slane %v626, %v630
    %v633 = vmul.f32 %v610, %v631
    %v634 = vmul.f32 %v611, %v631
    %v635 = vmul.f32 %v612, %v631
    %v636 = vmul.f32 %v613, %v631
    %v637 = vmul.f32 %v614, %v631
    %v638 = vmul.f32 %v615, %v631
    %v639 = vmul.f32 %v616, %v631
    %v640 = vmul.f32 %v617, %v631
    %v641 = vmul.f32 %v618, %v631
    %v642 = vmul.f32 %v619, %v631
    %v643 = vmul.f32 %v620, %v631
    %v644 = vmul.f32 %v621, %v631
    %v645 = vmul.f32 %v622, %v631
    %v646 = vmul.f32 %v623, %v631
    %v647 = vmul.f32 %v624, %v631
    %v648 = vmul.f32 %v625, %v631
    %v649 = vsel %vm78, %v633, 0.0
    %650 = vadd.xlane.f32.xlu0 %v649
    %v651 = vpop.xlane.xlu0 %650
    %v652 = vsel %vm78, %v634, 0.0
    %653 = vadd.xlane.f32.xlu0 %v652
    %v654 = vpop.xlane.xlu0 %653
    %v655 = vsel %vm78, %v635, 0.0
    %656 = vadd.xlane.f32.xlu0 %v655
    %v657 = vpop.xlane.xlu0 %656
    %v658 = vsel %vm78, %v636, 0.0
    %659 = vadd.xlane.f32.xlu0 %v658
    %v660 = vpop.xlane.xlu0 %659
    %v661 = vsel %vm78, %v637, 0.0
    %662 = vadd.xlane.f32.xlu0 %v661
    %v663 = vpop.xlane.xlu0 %662
    %v664 = vsel %vm78, %v638, 0.0
    %665 = vadd.xlane.f32.xlu0 %v664
    %v666 = vpop.xlane.xlu0 %665
    %v667 = vsel %vm78, %v639, 0.0
    %668 = vadd.xlane.f32.xlu0 %v667
    %v669 = vpop.xlane.xlu0 %668
    %v670 = vsel %vm78, %v640, 0.0
    %671 = vadd.xlane.f32.xlu0 %v670
    %v672 = vpop.xlane.xlu0 %671
    %v673 = vsel %vm78, %v641, 0.0
    %674 = vadd.xlane.f32.xlu0 %v673
    %v675 = vpop.xlane.xlu0 %674
    %v676 = vsel %vm78, %v642, 0.0
    %677 = vadd.xlane.f32.xlu0 %v676
    %v678 = vpop.xlane.xlu0 %677
    %v679 = vsel %vm78, %v643, 0.0
    %680 = vadd.xlane.f32.xlu0 %v679
    %v681 = vpop.xlane.xlu0 %680
    %v682 = vsel %vm78, %v644, 0.0
    %683 = vadd.xlane.f32.xlu0 %v682
    %v684 = vpop.xlane.xlu0 %683
    %v685 = vsel %vm78, %v645, 0.0
    %686 = vadd.xlane.f32.xlu0 %v685
    %v687 = vpop.xlane.xlu0 %686
    %v688 = vsel %vm78, %v646, 0.0
    %689 = vadd.xlane.f32.xlu0 %v688
    %v690 = vpop.xlane.xlu0 %689
    %v691 = vsel %vm78, %v647, 0.0
    %692 = vadd.xlane.f32.xlu0 %v691
    %v693 = vpop.xlane.xlu0 %692
    %v694 = vsel %vm78, %v648, 0.0
    %695 = vadd.xlane.f32.xlu0 %v694
    %v696 = vpop.xlane.xlu0 %695
    %s697 = sld [smem:[#allocation2]]
    %v698 = vstv %s697
    %v699 = vadd.f32 %v651, %v698
    %v700 = vadd.f32 %v654, %v698
    %v701 = vadd.f32 %v657, %v698
    %v702 = vadd.f32 %v660, %v698
    %v703 = vadd.f32 %v663, %v698
    %v704 = vadd.f32 %v666, %v698
    %v705 = vadd.f32 %v669, %v698
    %v706 = vadd.f32 %v672, %v698
    %v707 = vadd.f32 %v675, %v698
    %v708 = vadd.f32 %v678, %v698
    %v709 = vadd.f32 %v681, %v698
    %v710 = vadd.f32 %v684, %v698
    %v711 = vadd.f32 %v687, %v698
    %v712 = vadd.f32 %v690, %v698
    %v713 = vadd.f32 %v693, %v698
    %v714 = vadd.f32 %v696, %v698
    %v715 = vlaneseq
    %v716 = vand.u32 %v715, 127
    %v717 = vld [vmem:[%s0] sm:$0xff]
    %718 = vset.pattern.permute.xlu0 0
    %719 = vperm.xlu0 %718, %v717
    %v720 = vpop.permute.xlu0 %719
    %vm721 = vcmp.lt.s32.totalorder %v716, %v720
    %v738 = vlaneseq
    %v739 = vshrl.u32 %v738, 7
    %v740 = vsub.s32 %v716, %v739
    %v741 = vrot.slane %v699, %v740
    %v742 = vadd.s32 %v716, 4294967288
    %v743 = vlaneseq
    %v744 = vshrl.u32 %v743, 7
    %v745 = vsub.s32 %v742, %v744
    %v746 = vrot.slane %v700, %v745
    %vm747 = vcmask 130112
    %v748 = vsel %vm747, %v746, %v741
    %v749 = vlaneseq
    %v750 = vshrl.u32 %v749, 7
    %v751 = vsub.s32 %v716, %v750
    %v752 = vrot.slane %v701, %v751
    %v753 = vlaneseq
    %v754 = vshrl.u32 %v753, 7
    %v755 = vsub.s32 %v742, %v754
    %v756 = vrot.slane %v702, %v755
    %v757 = vsel %vm747, %v756, %v752
    %v758 = vlaneseq
    %v759 = vshrl.u32 %v758, 7
    %v760 = vsub.s32 %v716, %v759
    %v761 = vrot.slane %v703, %v760
    %v762 = vlaneseq
    %v763 = vshrl.u32 %v762, 7
    %v764 = vsub.s32 %v742, %v763
    %v765 = vrot.slane %v704, %v764
    %v766 = vsel %vm747, %v765, %v761
    %v767 = vlaneseq
    %v768 = vshrl.u32 %v767, 7
    %v769 = vsub.s32 %v716, %v768
    %v770 = vrot.slane %v705, %v769
    %v771 = vlaneseq
    %v772 = vshrl.u32 %v771, 7
    %v773 = vsub.s32 %v742, %v772
    %v774 = vrot.slane %v706, %v773
    %v775 = vsel %vm747, %v774, %v770
    %v776 = vlaneseq
    %v777 = vshrl.u32 %v776, 7
    %v778 = vsub.s32 %v716, %v777
    %v779 = vrot.slane %v707, %v778
    %v780 = vlaneseq
    %v781 = vshrl.u32 %v780, 7
    %v782 = vsub.s32 %v742, %v781
    %v783 = vrot.slane %v708, %v782
    %v784 = vsel %vm747, %v783, %v779
    %v785 = vlaneseq
    %v786 = vshrl.u32 %v785, 7
    %v787 = vsub.s32 %v716, %v786
    %v788 = vrot.slane %v709, %v787
    %v789 = vlaneseq
    %v790 = vshrl.u32 %v789, 7
    %v791 = vsub.s32 %v742, %v790
    %v792 = vrot.slane %v710, %v791
    %v793 = vsel %vm747, %v792, %v788
    %v794 = vlaneseq
    %v795 = vshrl.u32 %v794, 7
    %v796 = vsub.s32 %v716, %v795
    %v797 = vrot.slane %v711, %v796
    %v798 = vlaneseq
    %v799 = vshrl.u32 %v798, 7
    %v800 = vsub.s32 %v742, %v799
    %v801 = vrot.slane %v712, %v800
    %v802 = vsel %vm747, %v801, %v797
    %v803 = vlaneseq
    %v804 = vshrl.u32 %v803, 7
    %v805 = vsub.s32 %v716, %v804
    %v806 = vrot.slane %v713, %v805
    %v807 = vlaneseq
    %v808 = vshrl.u32 %v807, 7
    %v809 = vsub.s32 %v742, %v808
    %v810 = vrot.slane %v714, %v809
    %v811 = vsel %vm747, %v810, %v806
    %vm812 = vcmask 1041409
    %v813 = vsel %vm812, %v757, %v748
    %vm814 = vcmask 1042434
    %v815 = vsel %vm814, %v766, %v813
    %vm816 = vcmask 1043459
    %v817 = vsel %vm816, %v775, %v815
    %vm818 = vcmask 1044484
    %v819 = vsel %vm818, %v784, %v817
    %vm820 = vcmask 1045509
    %v821 = vsel %vm820, %v793, %v819
    %vm822 = vcmask 1046534
    %v823 = vsel %vm822, %v802, %v821
    %vm824 = vcmask 1047559
    %v825 = vsel %vm824, %v811, %v823
    %v827 = vsel %vm721, %v825, -inf
    %v828 = vmul.f32 %v827, 2.0
    %vm829 = vcmask 130048
    %v830 = vsel %vm829, %v828, -inf
    %831 = vmax.xlane.f32.xlu0 %v830
    %v832 = vpop.xlane.xlu0 %831
    %v833 = vsub.f32 %v828, %v832
    %v834 = vmul.f32 %v833, 1.442695
    %v835 = vpow.pop %v834
    %v836 = vsel %vm829, %v835, 0.0
    %837 = vadd.xlane.f32.xlu0 %v836
    %v838 = vpop.xlane.xlu0 %837
    %v839 = vrcp.pop %v838
    %v840 = vmul.f32 %v835, %v839
    %841 = vst.msk [vmem:[#allocation7] sm:$0xff] %vm829, %v840
    %v842 = vlaneseq
    %v843 = vshrl.u32 %v842, 7
    %v844 = vsub.s32 0, %v843
    %v845 = vrot.slane %v840, %v844
    %847 = vbcast.lane.b32.xlu0 %v845, 256
    %v848 = vpop.permute.xlu0 %847
    %s850 = sor.u32 256, 8
    %851 = vbcast.lane.b32.xlu0 %v845, %s850
    %v852 = vpop.permute.xlu0 %851
    %v853 = vlaneseq
    %v854 = vshrl.u32 %v853, 7
    %v855 = vsub.s32 1, %v854
    %v856 = vrot.slane %v840, %v855
    %858 = vbcast.lane.b32.xlu0 %v856, 256
    %v859 = vpop.permute.xlu0 %858
    %s861 = sor.u32 256, 8
    %862 = vbcast.lane.b32.xlu0 %v856, %s861
    %v863 = vpop.permute.xlu0 %862
    %v864 = vlaneseq
    %v865 = vshrl.u32 %v864, 7
    %v866 = vsub.s32 2, %v865
    %v867 = vrot.slane %v840, %v866
    %869 = vbcast.lane.b32.xlu0 %v867, 256
    %v870 = vpop.permute.xlu0 %869
    %s872 = sor.u32 256, 8
    %873 = vbcast.lane.b32.xlu0 %v867, %s872
    %v874 = vpop.permute.xlu0 %873
    %v875 = vlaneseq
    %v876 = vshrl.u32 %v875, 7
    %v877 = vsub.s32 3, %v876
    %v878 = vrot.slane %v840, %v877
    %880 = vbcast.lane.b32.xlu0 %v878, 256
    %v881 = vpop.permute.xlu0 %880
    %s883 = sor.u32 256, 8
    %884 = vbcast.lane.b32.xlu0 %v878, %s883
    %v885 = vpop.permute.xlu0 %884
    %v886 = vlaneseq
    %v887 = vshrl.u32 %v886, 7
    %v888 = vsub.s32 4, %v887
    %v889 = vrot.slane %v840, %v888
    %891 = vbcast.lane.b32.xlu0 %v889, 256
    %v892 = vpop.permute.xlu0 %891
    %s894 = sor.u32 256, 8
    %895 = vbcast.lane.b32.xlu0 %v889, %s894
    %v896 = vpop.permute.xlu0 %895
    %v897 = vlaneseq
    %v898 = vshrl.u32 %v897, 7
    %v899 = vsub.s32 5, %v898
    %v900 = vrot.slane %v840, %v899
    %902 = vbcast.lane.b32.xlu0 %v900, 256
    %v903 = vpop.permute.xlu0 %902
    %s905 = sor.u32 256, 8
    %906 = vbcast.lane.b32.xlu0 %v900, %s905
    %v907 = vpop.permute.xlu0 %906
    %v908 = vlaneseq
    %v909 = vshrl.u32 %v908, 7
    %v910 = vsub.s32 6, %v909
    %v911 = vrot.slane %v840, %v910
    %913 = vbcast.lane.b32.xlu0 %v911, 256
    %v914 = vpop.permute.xlu0 %913
    %s916 = sor.u32 256, 8
    %917 = vbcast.lane.b32.xlu0 %v911, %s916
    %v918 = vpop.permute.xlu0 %917
    %v919 = vlaneseq
    %v920 = vshrl.u32 %v919, 7
    %v921 = vsub.s32 7, %v920
    %v922 = vrot.slane %v840, %v921
    %924 = vbcast.lane.b32.xlu0 %v922, 256
    %v925 = vpop.permute.xlu0 %924
    %s927 = sor.u32 256, 8
    %928 = vbcast.lane.b32.xlu0 %v922, %s927
    %v929 = vpop.permute.xlu0 %928
    %v930 = vmul.f32 %v51, %v848
    %v931 = vmul.f32 %v52, %v852
    %v932 = vmul.f32 %v53, %v859
    %v933 = vmul.f32 %v54, %v863
    %v934 = vmul.f32 %v55, %v870
    %v935 = vmul.f32 %v56, %v874
    %v936 = vmul.f32 %v57, %v881
    %v937 = vmul.f32 %v58, %v885
    %v938 = vmul.f32 %v59, %v892
    %v939 = vmul.f32 %v60, %v896
    %v940 = vmul.f32 %v61, %v903
    %v941 = vmul.f32 %v62, %v907
    %v942 = vmul.f32 %v63, %v914
    %v943 = vmul.f32 %v64, %v918
    %v944 = vmul.f32 %v65, %v925
    %v945 = vmul.f32 %v66, %v929
    %v946 = vsel %vm78, %v930, 0.0
    %v947 = vsel %vm78, %v931, 0.0
    %v948 = vadd.f32 %v946, %v947
    %v949 = vrot.slane %v948, 4
    %v950 = vadd.f32 %v948, %v949
    %v951 = vrot.slane %v950, 2
    %v952 = vadd.f32 %v950, %v951
    %v953 = vrot.slane %v952, 1
    %v954 = vadd.f32 %v952, %v953
    %v955 = vsel %vm78, %v932, 0.0
    %v956 = vsel %vm78, %v933, 0.0
    %v957 = vadd.f32 %v955, %v956
    %v958 = vrot.slane %v957, 4
    %v959 = vadd.f32 %v957, %v958
    %v960 = vrot.slane %v959, 2
    %v961 = vadd.f32 %v959, %v960
    %v962 = vrot.slane %v961, 1
    %v963 = vadd.f32 %v961, %v962
    %v964 = vsel %vm78, %v934, 0.0
    %v965 = vsel %vm78, %v935, 0.0
    %v966 = vadd.f32 %v964, %v965
    %v967 = vrot.slane %v966, 4
    %v968 = vadd.f32 %v966, %v967
    %v969 = vrot.slane %v968, 2
    %v970 = vadd.f32 %v968, %v969
    %v971 = vrot.slane %v970, 1
    %v972 = vadd.f32 %v970, %v971
    %v973 = vsel %vm78, %v936, 0.0
    %v974 = vsel %vm78, %v937, 0.0
    %v975 = vadd.f32 %v973, %v974
    %v976 = vrot.slane %v975, 4
    %v977 = vadd.f32 %v975, %v976
    %v978 = vrot.slane %v977, 2
    %v979 = vadd.f32 %v977, %v978
    %v980 = vrot.slane %v979, 1
    %v981 = vadd.f32 %v979, %v980
    %v982 = vsel %vm78, %v938, 0.0
    %v983 = vsel %vm78, %v939, 0.0
    %v984 = vadd.f32 %v982, %v983
    %v985 = vrot.slane %v984, 4
    %v986 = vadd.f32 %v984, %v985
    %v987 = vrot.slane %v986, 2
    %v988 = vadd.f32 %v986, %v987
    %v989 = vrot.slane %v988, 1
    %v990 = vadd.f32 %v988, %v989
    %v991 = vsel %vm78, %v940, 0.0
    %v992 = vsel %vm78, %v941, 0.0
    %v993 = vadd.f32 %v991, %v992
    %v994 = vrot.slane %v993, 4
    %v995 = vadd.f32 %v993, %v994
    %v996 = vrot.slane %v995, 2
    %v997 = vadd.f32 %v995, %v996
    %v998 = vrot.slane %v997, 1
    %v999 = vadd.f32 %v997, %v998
    %v1000 = vsel %vm78, %v942, 0.0
    %v1001 = vsel %vm78, %v943, 0.0
    %v1002 = vadd.f32 %v1000, %v1001
    %v1003 = vrot.slane %v1002, 4
    %v1004 = vadd.f32 %v1002, %v1003
    %v1005 = vrot.slane %v1004, 2
    %v1006 = vadd.f32 %v1004, %v1005
    %v1007 = vrot.slane %v1006, 1
    %v1008 = vadd.f32 %v1006, %v1007
    %v1009 = vsel %vm78, %v944, 0.0
    %v1010 = vsel %vm78, %v945, 0.0
    %v1011 = vadd.f32 %v1009, %v1010
    %v1012 = vrot.slane %v1011, 4
    %v1013 = vadd.f32 %v1011, %v1012
    %v1014 = vrot.slane %v1013, 2
    %v1015 = vadd.f32 %v1013, %v1014
    %v1016 = vrot.slane %v1015, 1
    %v1017 = vadd.f32 %v1015, %v1016
    %v1026 = vsel %vm812, %v963, %v954
    %v1027 = vsel %vm814, %v972, %v1026
    %v1028 = vsel %vm816, %v981, %v1027
    %v1029 = vsel %vm818, %v990, %v1028
    %v1030 = vsel %vm820, %v999, %v1029
    %v1031 = vsel %vm822, %v1008, %v1030
    %v1032 = vsel %vm824, %v1017, %v1031
    %1034 = vst.msk [vmem:[#allocation6] sm:$0xff] %vm78, %v1032
    // Predicated region
    $region42: #{tpu_custom_call.1} parent=1 // pred_check
      _
    $region43: #{tpu_custom_call.1} parent=1 // pred_check_branch
      %1036 = sbr.rel (0) target = $region45
    $region44: #{tpu_custom_call.1} parent=1 // pred_region
      %s1038 = ssub.s32 128, 128
      %1039 = vsyncadd [#allocation5], %s1038
      %s1041 = sshll.u32 [#allocation6], 4
      %s1042 = int_to_ptr.vmem [resolvable:$true] %s1041
      %1044 = dma.vmem_to_hbm [thread:$0]  %s1042, 128, %s9, [#allocation5]
    $region45: #{tpu_custom_call.1} parent=1 // pred_fallthru
      _
    // Predicated region
    $region46: #{tpu_custom_call.1} parent=1 // pred_check
      _
    $region47: #{tpu_custom_call.1} parent=1 // pred_check_branch
      %1046 = sbr.rel (0) target = $region49
    $region48: #{tpu_custom_call.1} parent=1 // pred_region
      %s1048 = ssub.s32 128, 128
      %1049 = vsyncadd [#allocation8], %s1048
      %s1051 = sshll.u32 [#allocation7], 4
      %s1052 = int_to_ptr.vmem [resolvable:$true] %s1051
      %1054 = dma.vmem_to_hbm [thread:$0]  %s1052, 128, %s10, [#allocation8]
    $region49: #{tpu_custom_call.1} parent=1 // pred_fallthru
      _
    // Predicated region
    $region50: #{tpu_custom_call.1} parent=1 // pred_check
      _
    $region51: #{tpu_custom_call.1} parent=1 // pred_check_branch
      %1056 = sbr.rel (0) target = $region53
    $region52: #{tpu_custom_call.1} parent=1 // pred_region
      %1057 = dma.done [#allocation5], 128
    $region53: #{tpu_custom_call.1} parent=1 // pred_fallthru
      _
    // Predicated region
    $region54: #{tpu_custom_call.1} parent=1 // pred_check
      _
    $region55: #{tpu_custom_call.1} parent=1 // pred_check_branch
      %1059 = sbr.rel (0) target = $region57
    $region56: #{tpu_custom_call.1} parent=1 // pred_region
      %1060 = dma.done [#allocation8], 128
    $region57: #{tpu_custom_call.1} parent=1 // pred_fallthru
      _
    %1061 = vsyncpa [#allocation4], 1
    %1062 = vsyncpa [#allocation5], 1
    %1063 = vsyncpa [#allocation8], 1

</llo_original>
